<compile_context>
chip_gen: v7x
topology: tpu7x:2x2x1
jax: 0.10.0
libtpu: 0.0.40
codegen_flags: <defaults>
</compile_context>

<pallas_src>
import functools
import math

import jax
import jax.numpy as jnp
from jax.experimental import pallas as pl
from jax.experimental.pallas import tpu as pltpu

_MiB = 1024 * 1024
_LANE_CANDIDATES = (2048, 1024, 512, 256, 128)
_SMALL_INPUT_BYTES = 512 * 1024  # below this, plain XLA add wins


def _add_kernel(x_ref, y_ref, o_ref):
    # Elementwise add on the current VMEM tile (VPU).  Cast in-kernel so the
    # wrapper never materializes promoted copies in HBM.  jnp broadcasting
    # also handles a (1,1) scalar-operand tile against a (rows, lanes) tile.
    o_ref[...] = x_ref[...].astype(o_ref.dtype) + y_ref[...].astype(o_ref.dtype)


@functools.lru_cache(maxsize=1)
def _vmem_budget_bytes():
    """Returns (scoped vmem_limit_bytes, per-grid-step footprint budget)."""
    cap = None
    try:
        info = pltpu.get_tpu_info()
        cap = getattr(info, "vmem_capacity_bytes", None)
    except Exception:
        cap = None
    if not cap:
        cap = 64 * _MiB  # conservative default (v7x per-TC VMEM)
    if cap >= 96 * _MiB:      # v5e / v6e: 128 MiB physical VMEM
        vmem_limit = 64 * _MiB
    else:                     # v7x: 64 MiB physical VMEM per TC
        vmem_limit = 48 * _MiB
    step_budget = (vmem_limit * 3) // 4   # headroom for pipeline bookkeeping
    return vmem_limit, step_budget


def _pick_2d(n):
    """Widest lane count (multiple of 128) dividing n, preferring >= 8 rows."""
    best = None
    for lanes in _LANE_CANDIDATES:
        if n % lanes == 0:
            if best is None:
                best = lanes
            if (n // lanes) >= 8:
                return n // lanes, lanes
    if best is not None:
        return n // best, best
    return None


def _pick_block_rows(rows, lanes, step_bytes_per_elem, step_budget):
    """Rows per block so 2 pipeline buffers of (x, y, out) fit the budget."""
    max_elems = step_budget // max(step_bytes_per_elem, 1)
    br = max_elems // lanes
    if br >= rows:
        return rows
    br = max(32, (br // 32) * 32)   # multiple of 32 sublanes: safe for all dtypes
    return min(br, rows)


def _ensure_two_steps(rows, block_rows):
    """Cap block_rows so the grid has >= 2 steps (keeps both v7x TCs busy)."""
    if block_rows < rows or rows < 16:
        return block_rows
    half = pl.cdiv(rows, 2)
    half = ((half + 7) // 8) * 8
    return min(half, rows)


def pallas_add(x, y, *, min_pallas_bytes=_SMALL_INPUT_BYTES):
    """out = x + y via a Pallas TPU kernel (HBM-bandwidth-bound)."""
    x = jnp.asarray(x)
    y = jnp.asarray(y)
    out_shape = jnp.broadcast_shapes(x.shape, y.shape)
    out_dtype = jnp.promote_types(x.dtype, y.dtype)
    n = math.prod(out_shape)

    if n == 0:
        return jnp.zeros(out_shape, out_dtype)

    x_item = x.dtype.itemsize
    y_item = y.dtype.itemsize
    o_item = jnp.dtype(out_dtype).itemsize

    total_bytes = n * (x_item + y_item + o_item)
    if total_bytes < min_pallas_bytes:
        # pallas_call dispatch + pipeline prologue dominate at tiny sizes; a
        # plain XLA add is faster and fusable with neighbouring ops.
        return (x + y).astype(out_dtype)

    # Broadcast handling:
    #  * same shape          -> hot path, zero extra copies
    #  * single-element side -> (1,1) BlockSpec tile, broadcast on the VPU
    #  * anything else       -> rare path, materialize the broadcast.
    x_scalar = x.size == 1 and n > 1
    y_scalar = y.size == 1 and n > 1
    if x.shape != out_shape and not x_scalar:
        # TODO(synk): express general (non-scalar) broadcasts via BlockSpec
        # index_maps (stride-0 dims) instead of materializing.
        x = jnp.broadcast_to(x, out_shape)
    if y.shape != out_shape and not y_scalar:
        y = jnp.broadcast_to(y, out_shape)

    cost = pl.CostEstimate(
        flops=n,
        transcendentals=0,
        bytes_accessed=n * o_item + x.size * x_item + y.size * y_item,
    )

    vmem_limit, step_budget = _vmem_budget_bytes()
    step_bytes_per_elem = 2 * (o_item
                               + (0 if x_scalar else x_item)
                               + (0 if y_scalar else y_item))

    dims2d = _pick_2d(n)
    if dims2d is None:
        # Ragged total size (not a multiple of 128): pad the flat view up to a
        # lane multiple and reuse the same tiled path (bounded VMEM for large
        # ragged inputs); the pad is sliced off afterwards.
        lanes = 128
        rows = pl.cdiv(n, lanes)
        padded = rows * lanes

        def _flat(a):
            if a.size == 1:
                return a.reshape(1, 1)
            f = a.reshape(-1)
            return jnp.pad(f, (0, padded - n)).reshape(rows, lanes)

        x2 = _flat(x)
        y2 = _flat(y)
    else:
        rows, lanes = dims2d
        # Contiguous-array reshape is metadata-only (no extra HBM pass).
        x2 = x.reshape(1, 1) if x_scalar else x.reshape(rows, lanes)
        y2 = y.reshape(1, 1) if y_scalar else y.reshape(rows, lanes)

    block_rows = _pick_block_rows(rows, lanes, step_bytes_per_elem, step_budget)
    block_rows = _ensure_two_steps(rows, block_rows)
    grid = (pl.cdiv(rows, block_rows),)  # partial last block masked by Pallas

    def _tile_spec(is_scalar):
        if is_scalar:
            return pl.BlockSpec((1, 1), lambda i: (0, 0))
        return pl.BlockSpec((block_rows, lanes), lambda i: (i, 0))

    out2 = pl.pallas_call(
        _add_kernel,
        out_shape=jax.ShapeDtypeStruct((rows, lanes), out_dtype),
        grid=grid,
        in_specs=[_tile_spec(x_scalar), _tile_spec(y_scalar)],
        out_specs=pl.BlockSpec((block_rows, lanes), lambda i: (i, 0)),
        compiler_params=pltpu.CompilerParams(
            dimension_semantics=("parallel",),
            vmem_limit_bytes=vmem_limit,
        ),
        cost_estimate=cost,
    )(x2, y2)

    if dims2d is None:
        return out2.reshape(-1)[:n].reshape(out_shape)
    return out2.reshape(out_shape)


if __name__ == "__main__":
    key = jax.random.PRNGKey(0)
    kx, ky = jax.random.split(key)
    # Small NCHW-shaped inputs consistent with typical module usage.
    x = jax.random.normal(kx, (2, 4, 16, 16), dtype=jnp.float32)
    y = jax.random.normal(ky, (2, 4, 16, 16), dtype=jnp.float32)

    # Force the Pallas path (this example is only ~24 KiB of traffic, which
    # would otherwise take the small-input XLA escape hatch).
    out = pallas_add(x, y, min_pallas_bytes=0)
    jax.block_until_ready(out)
    ref = x + y
    assert out.shape == ref.shape and out.dtype == ref.dtype
    assert jnp.allclose(out, ref, atol=1e-6, rtol=1e-6)

    # Exercise the scalar-broadcast path (one operand as a (1,1) tile).
    s = jnp.float32(2.5)
    out_s = pallas_add(x, s, min_pallas_bytes=0)
    jax.block_until_ready(out_s)
    assert jnp.allclose(out_s, x + s, atol=1e-6, rtol=1e-6)

    # Default path (small-input escape hatch) must match too.
    out_d = pallas_add(x, y)
    assert jnp.allclose(out_d, ref, atol=1e-6, rtol=1e-6)

    print("KERNEL_OK")
</pallas_src>

<mosaic_0001>
module attributes {stable_mosaic.version = 11 : i64} {
  func.func @_add_kernel(%arg0: i32, %arg1: memref<8x256xf32, #tpu.memory_space<vmem>>, %arg2: memref<8x256xf32, #tpu.memory_space<vmem>>, %arg3: memref<8x256xf32, #tpu.memory_space<vmem>>) attributes {dimension_semantics = [#tpu.dimension_semantics<parallel>], iteration_bounds = array<i64: 1>, scalar_prefetch = 0 : i64, scratch_operands = 0 : i64, tpu.core_type = #tpu.core_type<tc>, window_params = [{transform_indices = @transform_0, window_bounds = array<i64: 8, 256>}, {transform_indices = @transform_1, window_bounds = array<i64: 8, 256>}, {transform_indices = @transform_2, window_bounds = array<i64: 8, 256>}]} {
    %c0 = arith.constant 0 : index
    %c0_0 = arith.constant 0 : index
    %0 = vector.load %arg1[%c0, %c0_0] : memref<8x256xf32, #tpu.memory_space<vmem>>, vector<8x256xf32>
    %c0_1 = arith.constant 0 : index
    %c0_2 = arith.constant 0 : index
    %1 = vector.load %arg2[%c0_1, %c0_2] : memref<8x256xf32, #tpu.memory_space<vmem>>, vector<8x256xf32>
    %2 = arith.addf %0, %1 : vector<8x256xf32>
    %c0_3 = arith.constant 0 : index
    %c0_4 = arith.constant 0 : index
    %3 = vector.load %arg3[%c0_3, %c0_4] : memref<8x256xf32, #tpu.memory_space<vmem>>, vector<8x256xf32>
    tpu.vector_store %arg3[%c0_3, %c0_4], %2 {strides = array<i32>} : memref<8x256xf32, #tpu.memory_space<vmem>>, vector<8x256xf32>,
    return
  }
  func.func @transform_0(%arg0: i32) -> (i32, i32) {
    %c0_i32 = arith.constant 0 : i32
    %c0_i32_0 = arith.constant 0 : i32
    return %arg0, %c0_i32 : i32, i32
  }
  func.func @transform_1(%arg0: i32) -> (i32, i32) {
    %c0_i32 = arith.constant 0 : i32
    %c0_i32_0 = arith.constant 0 : i32
    return %arg0, %c0_i32 : i32, i32
  }
  func.func @transform_2(%arg0: i32) -> (i32, i32) {
    %c0_i32 = arith.constant 0 : i32
    %c0_i32_0 = arith.constant 0 : i32
    return %arg0, %c0_i32 : i32, i32
  }
}

</mosaic_0001>

<llo_original>
// kernel: tpu_custom_call.1
$region0: #{tpu_custom_call.1}
  #allocation0 [shape = 'u32[]', space=smem, size = 0x4, offset = 0x4, fixed_abs, tag = 'smem constant byte address 0x4 - core index']
  #allocation1 [shape = 'u32[144,128]{1,0:T(1,128)}', space=vmem, size = 0x12000, scoped, tag = 'internal scratch']
  %s0 = inlined_call_operand.hbm [shape: f32[8,256], index: 0, kind: input, shape index: {}]
  %s1 = inlined_call_operand.hbm [shape: f32[8,256], index: 1, kind: input, shape index: {}]
  %s2 = inlined_call_operand.hbm [shape: f32[8,256], index: 2, kind: output, shape index: {}]
  %s3 = sld [smem:[#allocation0]]
  $region26: #{tpu_custom_call.1} parent=0
    _
  %s5 = ssub.s32 1, %s3
  %s6 = scalar_select 0, %s5, %s3
  $region1: #{tpu_custom_call.1} parent=0
    #allocation2 [shape = 'u8[8192]{0}', space=vmem, size = 0x2000, scoped, tag = 'input window, operand 0, single buffered']
    #allocation3 [shape = 's32[1]{0}', space=sflag, size = 0x4, scoped, tag = 'scoped memory for tpu_custom_call.1']
    #allocation4 [shape = 's32[1]{0}', space=sflag, size = 0x4, scoped, tag = 'scoped memory for tpu_custom_call.1']
    #allocation5 [shape = 'u8[8192]{0}', space=vmem, size = 0x2000, scoped, tag = 'input window, operand 1, single buffered']
    #allocation6 [shape = 's32[1]{0}', space=sflag, size = 0x4, scoped, tag = 'scoped memory for tpu_custom_call.1']
    #allocation7 [shape = 'u8[8192]{0}', space=vmem, size = 0x2000, scoped, tag = 'output window, operand 0, single buffered']
    %7 = vsyncpa [#allocation3], 0
    %8 = vsyncpa [#allocation6], 0
    %9 = vsyncpa [#allocation4], 0
    // Predicated region
    $region2: #{tpu_custom_call.1} parent=1 // pred_check
      _
    $region3: #{tpu_custom_call.1} parent=1 // pred_check_branch
      %11 = sbr.rel (0) target = $region5
    $region4: #{tpu_custom_call.1} parent=1 // pred_region
      %s13 = ssub.s32 256, 256
      %14 = vsyncadd [#allocation3], %s13
      %s16 = sshll.u32 [#allocation2], 4
      %s17 = int_to_ptr.vmem [resolvable:$true] %s16
      %19 = dma.hbm_to_vmem [thread:$0]  %s0, 256, %s17, [#allocation3]
    $region5: #{tpu_custom_call.1} parent=1 // pred_fallthru
      _
    // Predicated region
    $region6: #{tpu_custom_call.1} parent=1 // pred_check
      _
    $region7: #{tpu_custom_call.1} parent=1 // pred_check_branch
      %21 = sbr.rel (0) target = $region9
    $region8: #{tpu_custom_call.1} parent=1 // pred_region
      %s23 = ssub.s32 256, 256
      %24 = vsyncadd [#allocation6], %s23
      %s26 = sshll.u32 [#allocation5], 4
      %s27 = int_to_ptr.vmem [resolvable:$true] %s26
      %29 = dma.hbm_to_vmem [thread:$0]  %s1, 256, %s27, [#allocation6]
    $region9: #{tpu_custom_call.1} parent=1 // pred_fallthru
      _
    // Predicated region
    $region10: #{tpu_custom_call.1} parent=1 // pred_check
      _
    $region11: #{tpu_custom_call.1} parent=1 // pred_check_branch
      %31 = sbr.rel (0) target = $region13
    $region12: #{tpu_custom_call.1} parent=1 // pred_region
      %32 = dma.done [#allocation3], 256
    $region13: #{tpu_custom_call.1} parent=1 // pred_fallthru
      _
    // Predicated region
    $region14: #{tpu_custom_call.1} parent=1 // pred_check
      _
    $region15: #{tpu_custom_call.1} parent=1 // pred_check_branch
      %34 = sbr.rel (0) target = $region17
    $region16: #{tpu_custom_call.1} parent=1 // pred_region
      %35 = dma.done [#allocation6], 256
    $region17: #{tpu_custom_call.1} parent=1 // pred_fallthru
      _
    %v36 = vld [vmem:[#allocation2] sm:$0xff]
    %v37 = vld [vmem:[#allocation2 + $0x8] sm:$0xff]
    %v38 = vld [vmem:[#allocation5] sm:$0xff]
    %v39 = vld [vmem:[#allocation5 + $0x8] sm:$0xff]
    %v40 = vadd.f32 %v36, %v38
    %v41 = vadd.f32 %v37, %v39
    %42 = vst [vmem:[#allocation7] sm:$0xff] %v40
    %43 = vst [vmem:[#allocation7 + $0x8] sm:$0xff] %v41
    // Predicated region
    $region18: #{tpu_custom_call.1} parent=1 // pred_check
      _
    $region19: #{tpu_custom_call.1} parent=1 // pred_check_branch
      %45 = sbr.rel (0) target = $region21
    $region20: #{tpu_custom_call.1} parent=1 // pred_region
      %s47 = ssub.s32 256, 256
      %48 = vsyncadd [#allocation4], %s47
      %s50 = sshll.u32 [#allocation7], 4
      %s51 = int_to_ptr.vmem [resolvable:$true] %s50
      %53 = dma.vmem_to_hbm [thread:$0]  %s51, 256, %s2, [#allocation4]
    $region21: #{tpu_custom_call.1} parent=1 // pred_fallthru
      _
    // Predicated region
    $region22: #{tpu_custom_call.1} parent=1 // pred_check
      _
    $region23: #{tpu_custom_call.1} parent=1 // pred_check_branch
      %55 = sbr.rel (0) target = $region25
    $region24: #{tpu_custom_call.1} parent=1 // pred_region
      %56 = dma.done [#allocation4], 256
    $region25: #{tpu_custom_call.1} parent=1 // pred_fallthru
      _
    %57 = vsyncpa [#allocation3], 1
    %58 = vsyncpa [#allocation6], 1
    %59 = vsyncpa [#allocation4], 1

</llo_original>
